<compile_context>
chip_gen: v6e
topology: v6e:2x2x1
jax: 0.10.0
libtpu: 0.0.40
codegen_flags: <defaults>
</compile_context>

<pallas_src>
import jax
import jax.numpy as jnp
from jax.experimental import pallas as pl
from jax.experimental.pallas import tpu as pltpu


def _rope_kernel(q_ref, k_ref, cos_ref, sl_ref, sr_ref, qo_ref, ko_ref):
    """out = x * cos_full + roll(x,-1) * sin_left + roll(x,+1) * sin_right.

    cos_full/sin_left/sin_right are pre-expanded (flattened (S*D,)) so that per
    sequence position s and lane d:
      d = 2j  < D/2 : cos=cos_j,  sin_left=-sin_j, sin_right=0
      d = 2j+1< D/2 : cos=cos_j,  sin_left=0,      sin_right=+sin_j
      d >= D/2      : cos=1,      sin_left=0,      sin_right=0   (pass-through)
    which reproduces:
      out[2j]   = x[2j]  *cos_j - x[2j+1]*sin_j
      out[2j+1] = x[2j+1]*cos_j + x[2j]  *sin_j
      out[d>=D/2] = x[d]
    """
    sd = q_ref.shape[-1]
    c = cos_ref[...]    # (1, S*D)
    sl = sl_ref[...]    # (1, S*D)
    sr = sr_ref[...]    # (1, S*D)
    for x_ref, o_ref in ((q_ref, qo_ref), (k_ref, ko_ref)):
        x = x_ref[...]                               # (tbh, S*D)
        nxt = pltpu.roll(x, shift=sd - 1, axis=1)    # nxt[i] = x[(i+1) % sd]
        prv = pltpu.roll(x, shift=1, axis=1)         # prv[i] = x[(i-1) % sd]
        o_ref[...] = x * c + nxt * sl + prv * sr


def _choose_tbh(BH, SD, itemsize, target_tile_bytes=2 << 20):
    """Largest sublane tile that (a) divides BH, (b) satisfies the (8,128) block
    rule, (c) fits the VMEM budget, preferring a grid length >= 2 (megacore)."""
    row_bytes = SD * itemsize
    max_rows = max(1, target_tile_bytes // row_bytes)
    cands = [t for t in range(1, BH + 1)
             if BH % t == 0 and (t % 8 == 0 or t == BH)]
    fitting = [t for t in cands if t <= max_rows]
    pref = [t for t in fitting if BH // t >= 2]
    if pref:
        return max(pref)
    if fitting:
        return max(fitting)
    return min(cands)


def _apply_rope_pallas(q2, k2, cos_t, sl_t, sr_t, tbh,
                       vmem_limit_bytes=48 * 1024 * 1024):
    BH, SD = q2.shape
    assert BH % tbh == 0
    itemsize = q2.dtype.itemsize

    x_spec = pl.BlockSpec((tbh, SD), lambda i: (i, 0))
    t_spec = pl.BlockSpec((1, SD), lambda i: (0, 0))

    cost = pl.CostEstimate(
        flops=10 * BH * SD,                              # ~5 flops/elem, q and k
        transcendentals=0,
        bytes_accessed=(4 * BH * SD + 3 * SD) * itemsize,
    )

    return pl.pallas_call(
        _rope_kernel,
        out_shape=(jax.ShapeDtypeStruct((BH, SD), q2.dtype),
                   jax.ShapeDtypeStruct((BH, SD), k2.dtype)),
        grid=(BH // tbh,),
        in_specs=[x_spec, x_spec, t_spec, t_spec, t_spec],
        out_specs=(x_spec, x_spec),
        compiler_params=pltpu.CompilerParams(
            dimension_semantics=("parallel",),
            vmem_limit_bytes=vmem_limit_bytes,
        ),
        cost_estimate=cost,
    )(q2, k2, cos_t, sl_t, sr_t)


class RotaryEmbeddingPallas:
    """JAX/Pallas port of the PyTorch RotaryEmbedding module (forward only)."""

    def __init__(self, dim: int, max_seq_len: int = 2048, base: int = 10000):
        self.dim = dim
        self.max_seq_len = max_seq_len
        self.base = base
        # deterministic "buffer" init, exactly as in the PyTorch __init__
        self.inv_freq = 1.0 / (
            base ** (jnp.arange(0, dim, 2, dtype=jnp.float32) / dim)
        )

    def _tables(self, seq_len, head_dim, dtype):
        """Expanded, flattened (1, S*D) cos / signed-sin tables (built in f32)."""
        t = jnp.arange(seq_len, dtype=jnp.float32)
        freqs = jnp.einsum("i,j->ij", t, self.inv_freq)            # (S, dim//2)
        emb = jnp.concatenate([freqs, freqs], axis=-1)             # (S, dim) = (S, D//4)
        cos_v = jnp.cos(emb)
        sin_v = jnp.sin(emb)

        half = head_dim // 2
        cos_rep = jnp.repeat(cos_v, 2, axis=-1)                    # (S, half): c0,c0,c1,c1,...
        sin_rep = jnp.repeat(sin_v, 2, axis=-1)                    # (S, half): s0,s0,s1,s1,...
        even = (jnp.arange(half) % 2) == 0                         # (half,)

        ones = jnp.ones((seq_len, half), jnp.float32)
        zeros = jnp.zeros((seq_len, half), jnp.float32)
        cos_full = jnp.concatenate([cos_rep, ones], axis=-1)                          # (S, D)
        sin_left = jnp.concatenate([jnp.where(even, -sin_rep, 0.0), zeros], axis=-1)  # (S, D)
        sin_right = jnp.concatenate([jnp.where(even, 0.0, sin_rep), zeros], axis=-1)  # (S, D)

        SD = seq_len * head_dim
        return (cos_full.reshape(1, SD).astype(dtype),
                sin_left.reshape(1, SD).astype(dtype),
                sin_right.reshape(1, SD).astype(dtype))

    def __call__(self, q, k, seq_len):
        if seq_len > self.max_seq_len:
            raise ValueError(
                f"Sequence length {seq_len} exceeds maximum {self.max_seq_len}")
        B, H, S, D = q.shape
        assert k.shape == q.shape and k.dtype == q.dtype
        assert S == seq_len
        # broadcasting in the reference requires dim == head_dim // 4 (and D % 4 == 0)
        assert D % 4 == 0 and self.dim == D // 4, "module dim must equal head_dim // 4"

        cos_t, sl_t, sr_t = self._tables(S, D, q.dtype)
        BH, SD = B * H, S * D
        q2 = q.reshape(BH, SD)        # pure reshape (no data movement)
        k2 = k.reshape(BH, SD)
        tbh = _choose_tbh(BH, SD, q.dtype.itemsize)
        qo, ko = _apply_rope_pallas(q2, k2, cos_t, sl_t, sr_t, tbh)
        return qo.reshape(B, H, S, D), ko.reshape(B, H, S, D)


# ---------------- pure-JAX reference (mirrors the PyTorch code) ----------------
def apply_rotary_pos_emb_ref(x, cos, sin):
    half = x.shape[-1] // 2
    x_rot, x_pass = x[..., :half], x[..., half:]
    xr = jnp.stack([x_rot[..., ::2], x_rot[..., 1::2]], axis=-1)   # (..., D/4, 2)
    rot = jnp.stack(
        [xr[..., 0] * cos - xr[..., 1] * sin,
         xr[..., 1] * cos + xr[..., 0] * sin], axis=-1)
    rot = rot.reshape(rot.shape[:-2] + (-1,))
    return jnp.concatenate([rot, x_pass], axis=-1)


if __name__ == "__main__":
    B, H, S, D = 2, 4, 8, 32
    dim = D // 4  # = 8, required by the reference broadcasting convention

    key = jax.random.PRNGKey(0)
    kq, kk = jax.random.split(key)
    q = jax.random.normal(kq, (B, H, S, D), dtype=jnp.float32)
    k = jax.random.normal(kk, (B, H, S, D), dtype=jnp.float32)

    rope = RotaryEmbeddingPallas(dim=dim, max_seq_len=2048, base=10000)
    q_out, k_out = rope(q, k, seq_len=S)
    jax.block_until_ready((q_out, k_out))

    # correctness check against a direct transcription of the PyTorch forward
    t = jnp.arange(S, dtype=jnp.float32)
    freqs = jnp.einsum("i,j->ij", t, rope.inv_freq)
    emb = jnp.concatenate([freqs, freqs], axis=-1)
    cos = jnp.cos(emb)[None, None]   # (1, 1, S, dim)
    sin = jnp.sin(emb)[None, None]
    q_ref = apply_rotary_pos_emb_ref(q, cos, sin)
    k_ref = apply_rotary_pos_emb_ref(k, cos, sin)

    assert jnp.allclose(q_out, q_ref, atol=1e-5, rtol=1e-5)
    assert jnp.allclose(k_out, k_ref, atol=1e-5, rtol=1e-5)
    print("KERNEL_OK")
</pallas_src>

<mosaic_0001>
module attributes {stable_mosaic.version = 11 : i64} {
  func.func @_rope_kernel(%arg0: i32, %arg1: memref<8x256xf32, #tpu.memory_space<vmem>>, %arg2: memref<8x256xf32, #tpu.memory_space<vmem>>, %arg3: memref<1x256xf32, #tpu.memory_space<vmem>>, %arg4: memref<1x256xf32, #tpu.memory_space<vmem>>, %arg5: memref<1x256xf32, #tpu.memory_space<vmem>>, %arg6: memref<8x256xf32, #tpu.memory_space<vmem>>, %arg7: memref<8x256xf32, #tpu.memory_space<vmem>>) attributes {dimension_semantics = [#tpu.dimension_semantics<parallel>], iteration_bounds = array<i64: 1>, scalar_prefetch = 0 : i64, scratch_operands = 0 : i64, tpu.core_type = #tpu.core_type<tc>, window_params = [{transform_indices = @transform_0, window_bounds = array<i64: 8, 256>}, {transform_indices = @transform_1, window_bounds = array<i64: 8, 256>}, {pipeline_mode = #tpu.pipeline_mode<synchronous>, transform_indices = @transform_2, window_bounds = array<i64: 1, 256>}, {pipeline_mode = #tpu.pipeline_mode<synchronous>, transform_indices = @transform_3, window_bounds = array<i64: 1, 256>}, {pipeline_mode = #tpu.pipeline_mode<synchronous>, transform_indices = @transform_4, window_bounds = array<i64: 1, 256>}, {transform_indices = @transform_5, window_bounds = array<i64: 8, 256>}, {transform_indices = @transform_6, window_bounds = array<i64: 8, 256>}]} {
    %c0 = arith.constant 0 : index
    %c0_0 = arith.constant 0 : index
    %0 = vector.load %arg3[%c0, %c0_0] : memref<1x256xf32, #tpu.memory_space<vmem>>, vector<1x256xf32>
    %c0_1 = arith.constant 0 : index
    %c0_2 = arith.constant 0 : index
    %1 = vector.load %arg4[%c0_1, %c0_2] : memref<1x256xf32, #tpu.memory_space<vmem>>, vector<1x256xf32>
    %c0_3 = arith.constant 0 : index
    %c0_4 = arith.constant 0 : index
    %2 = vector.load %arg5[%c0_3, %c0_4] : memref<1x256xf32, #tpu.memory_space<vmem>>, vector<1x256xf32>
    %c0_5 = arith.constant 0 : index
    %c0_6 = arith.constant 0 : index
    %3 = vector.load %arg1[%c0_5, %c0_6] : memref<8x256xf32, #tpu.memory_space<vmem>>, vector<8x256xf32>
    %c255_i32 = arith.constant 255 : i32
    %4 = tpu.dynamic_rotate %3 by %c255_i32 dim 1 : vector<8x256xf32>, i32 -> vector<8x256xf32>
    %c1_i32 = arith.constant 1 : i32
    %5 = tpu.dynamic_rotate %3 by %c1_i32 dim 1 : vector<8x256xf32>, i32 -> vector<8x256xf32>
    %6 = vector.broadcast %0 : vector<1x256xf32> to vector<8x256xf32>
    %7 = arith.mulf %3, %6 : vector<8x256xf32>
    %8 = vector.broadcast %1 : vector<1x256xf32> to vector<8x256xf32>
    %9 = arith.mulf %4, %8 : vector<8x256xf32>
    %10 = arith.addf %7, %9 : vector<8x256xf32>
    %11 = vector.broadcast %2 : vector<1x256xf32> to vector<8x256xf32>
    %12 = arith.mulf %5, %11 : vector<8x256xf32>
    %13 = arith.addf %10, %12 : vector<8x256xf32>
    %c0_7 = arith.constant 0 : index
    %c0_8 = arith.constant 0 : index
    %14 = vector.load %arg6[%c0_7, %c0_8] : memref<8x256xf32, #tpu.memory_space<vmem>>, vector<8x256xf32>
    tpu.vector_store %arg6[%c0_7, %c0_8], %13 {strides = array<i32>} : memref<8x256xf32, #tpu.memory_space<vmem>>, vector<8x256xf32>,
    %c0_9 = arith.constant 0 : index
    %c0_10 = arith.constant 0 : index
    %15 = vector.load %arg2[%c0_9, %c0_10] : memref<8x256xf32, #tpu.memory_space<vmem>>, vector<8x256xf32>
    %c255_i32_11 = arith.constant 255 : i32
    %16 = tpu.dynamic_rotate %15 by %c255_i32_11 dim 1 : vector<8x256xf32>, i32 -> vector<8x256xf32>
    %c1_i32_12 = arith.constant 1 : i32
    %17 = tpu.dynamic_rotate %15 by %c1_i32_12 dim 1 : vector<8x256xf32>, i32 -> vector<8x256xf32>
    %18 = vector.broadcast %0 : vector<1x256xf32> to vector<8x256xf32>
    %19 = arith.mulf %15, %18 : vector<8x256xf32>
    %20 = vector.broadcast %1 : vector<1x256xf32> to vector<8x256xf32>
    %21 = arith.mulf %16, %20 : vector<8x256xf32>
    %22 = arith.addf %19, %21 : vector<8x256xf32>
    %23 = vector.broadcast %2 : vector<1x256xf32> to vector<8x256xf32>
    %24 = arith.mulf %17, %23 : vector<8x256xf32>
    %25 = arith.addf %22, %24 : vector<8x256xf32>
    %c0_13 = arith.constant 0 : index
    %c0_14 = arith.constant 0 : index
    %26 = vector.load %arg7[%c0_13, %c0_14] : memref<8x256xf32, #tpu.memory_space<vmem>>, vector<8x256xf32>
    tpu.vector_store %arg7[%c0_13, %c0_14], %25 {strides = array<i32>} : memref<8x256xf32, #tpu.memory_space<vmem>>, vector<8x256xf32>,
    return
  }
  func.func @transform_0(%arg0: i32) -> (i32, i32) {
    %c0_i32 = arith.constant 0 : i32
    %c0_i32_0 = arith.constant 0 : i32
    return %arg0, %c0_i32 : i32, i32
  }
  func.func @transform_1(%arg0: i32) -> (i32, i32) {
    %c0_i32 = arith.constant 0 : i32
    %c0_i32_0 = arith.constant 0 : i32
    return %arg0, %c0_i32 : i32, i32
  }
  func.func @transform_2(%arg0: i32) -> (i32, i32) {
    %c0_i32 = arith.constant 0 : i32
    %c0_i32_0 = arith.constant 0 : i32
    %c0_i32_1 = arith.constant 0 : i32
    return %c0_i32, %c0_i32_0 : i32, i32
  }
  func.func @transform_3(%arg0: i32) -> (i32, i32) {
    %c0_i32 = arith.constant 0 : i32
    %c0_i32_0 = arith.constant 0 : i32
    %c0_i32_1 = arith.constant 0 : i32
    return %c0_i32, %c0_i32_0 : i32, i32
  }
  func.func @transform_4(%arg0: i32) -> (i32, i32) {
    %c0_i32 = arith.constant 0 : i32
    %c0_i32_0 = arith.constant 0 : i32
    %c0_i32_1 = arith.constant 0 : i32
    return %c0_i32, %c0_i32_0 : i32, i32
  }
  func.func @transform_5(%arg0: i32) -> (i32, i32) {
    %c0_i32 = arith.constant 0 : i32
    %c0_i32_0 = arith.constant 0 : i32
    return %arg0, %c0_i32 : i32, i32
  }
  func.func @transform_6(%arg0: i32) -> (i32, i32) {
    %c0_i32 = arith.constant 0 : i32
    %c0_i32_0 = arith.constant 0 : i32
    return %arg0, %c0_i32 : i32, i32
  }
}

</mosaic_0001>

<llo_original>
// kernel: tpu_custom_call.1
$region0: #{tpu_custom_call.1}
  #allocation0 [shape = 'u32[]', space=smem, size = 0x4, offset = 0x4, fixed_abs, tag = 'smem constant byte address 0x4 - core index']
  #allocation1 [shape = 'u32[144,128]{1,0:T(1,128)}', space=vmem, size = 0x12000, scoped, tag = 'internal scratch']
  %s0 = inlined_call_operand.hbm [shape: f32[8,256], index: 0, kind: input, shape index: {}]
  %s1 = inlined_call_operand.hbm [shape: f32[8,256], index: 1, kind: input, shape index: {}]
  %s2 = inlined_call_operand.vmem [shape: f32[1,256], index: 2, kind: input, shape index: {}]
  %s3 = inlined_call_operand.vmem [shape: f32[1,256], index: 3, kind: input, shape index: {}]
  %s4 = inlined_call_operand.vmem [shape: f32[1,256], index: 4, kind: input, shape index: {}]
  %s5 = inlined_call_operand.hbm [shape: f32[8,256], index: 5, kind: output, shape index: {0}]
  %s6 = inlined_call_operand.hbm [shape: f32[8,256], index: 6, kind: output, shape index: {1}]
  %7 = xla_tuple %s5, %s6
  %s8 = sld [smem:[#allocation0]]
  $region46: #{tpu_custom_call.1} parent=0
    _
  %s10 = ssub.s32 1, %s8
  %s11 = scalar_select 0, %s10, %s8
  $region1: #{tpu_custom_call.1} parent=0
    #allocation2 [shape = 'u8[8192]{0}', space=vmem, size = 0x2000, scoped, tag = 'input window, operand 0, single buffered']
    #allocation3 [shape = 's32[1]{0}', space=sflag, size = 0x4, scoped, tag = 'scoped memory for tpu_custom_call.1']
    #allocation4 [shape = 's32[1]{0}', space=sflag, size = 0x4, scoped, tag = 'scoped memory for tpu_custom_call.1']
    #allocation5 [shape = 'u8[8192]{0}', space=vmem, size = 0x2000, scoped, tag = 'input window, operand 1, single buffered']
    #allocation6 [shape = 's32[1]{0}', space=sflag, size = 0x4, scoped, tag = 'scoped memory for tpu_custom_call.1']
    #allocation7 [shape = 'u8[8192]{0}', space=vmem, size = 0x2000, scoped, tag = 'output window, operand 0, single buffered']
    #allocation8 [shape = 'u8[8192]{0}', space=vmem, size = 0x2000, scoped, tag = 'output window, operand 1, single buffered']
    #allocation9 [shape = 's32[1]{0}', space=sflag, size = 0x4, scoped, tag = 'scoped memory for tpu_custom_call.1']
    %12 = vsyncpa [#allocation3], 0
    %13 = vsyncpa [#allocation6], 0
    %14 = vsyncpa [#allocation4], 0
    %15 = vsyncpa [#allocation9], 0
    // Predicated region
    $region2: #{tpu_custom_call.1} parent=1 // pred_check
      _
    $region3: #{tpu_custom_call.1} parent=1 // pred_check_branch
      %17 = sbr.rel (0) target = $region5
    $region4: #{tpu_custom_call.1} parent=1 // pred_region
      %s19 = ssub.s32 256, 256
      %20 = vsyncadd [#allocation3], %s19
      %s22 = sshll.u32 [#allocation2], 4
      %s23 = int_to_ptr.vmem [resolvable:$true] %s22
      %25 = dma.hbm_to_vmem [thread:$0]  %s0, 256, %s23, [#allocation3]
    $region5: #{tpu_custom_call.1} parent=1 // pred_fallthru
      _
    // Predicated region
    $region6: #{tpu_custom_call.1} parent=1 // pred_check
      _
    $region7: #{tpu_custom_call.1} parent=1 // pred_check_branch
      %27 = sbr.rel (0) target = $region9
    $region8: #{tpu_custom_call.1} parent=1 // pred_region
      %s29 = ssub.s32 256, 256
      %30 = vsyncadd [#allocation6], %s29
      %s32 = sshll.u32 [#allocation5], 4
      %s33 = int_to_ptr.vmem [resolvable:$true] %s32
      %35 = dma.hbm_to_vmem [thread:$0]  %s1, 256, %s33, [#allocation6]
    $region9: #{tpu_custom_call.1} parent=1 // pred_fallthru
      _
    // Predicated region
    $region10: #{tpu_custom_call.1} parent=1 // pred_check
      _
    $region11: #{tpu_custom_call.1} parent=1 // pred_check_branch
      %37 = sbr.rel (0) target = $region13
    $region12: #{tpu_custom_call.1} parent=1 // pred_region
      _
    $region13: #{tpu_custom_call.1} parent=1 // pred_fallthru
      _
    // Predicated region
    $region14: #{tpu_custom_call.1} parent=1 // pred_check
      _
    $region15: #{tpu_custom_call.1} parent=1 // pred_check_branch
      %39 = sbr.rel (0) target = $region17
    $region16: #{tpu_custom_call.1} parent=1 // pred_region
      _
    $region17: #{tpu_custom_call.1} parent=1 // pred_fallthru
      _
    // Predicated region
    $region18: #{tpu_custom_call.1} parent=1 // pred_check
      _
    $region19: #{tpu_custom_call.1} parent=1 // pred_check_branch
      %41 = sbr.rel (0) target = $region21
    $region20: #{tpu_custom_call.1} parent=1 // pred_region
      _
    $region21: #{tpu_custom_call.1} parent=1 // pred_fallthru
      _
    // Predicated region
    $region22: #{tpu_custom_call.1} parent=1 // pred_check
      _
    $region23: #{tpu_custom_call.1} parent=1 // pred_check_branch
      %43 = sbr.rel (0) target = $region25
    $region24: #{tpu_custom_call.1} parent=1 // pred_region
      %44 = dma.done [#allocation3], 256
    $region25: #{tpu_custom_call.1} parent=1 // pred_fallthru
      _
    // Predicated region
    $region26: #{tpu_custom_call.1} parent=1 // pred_check
      _
    $region27: #{tpu_custom_call.1} parent=1 // pred_check_branch
      %46 = sbr.rel (0) target = $region29
    $region28: #{tpu_custom_call.1} parent=1 // pred_region
      %47 = dma.done [#allocation6], 256
    $region29: #{tpu_custom_call.1} parent=1 // pred_fallthru
      _
    %v48 = vld [vmem:[%s2] sm:$0x3]
    %v49 = vld [vmem:[%s3] sm:$0x3]
    %v50 = vld [vmem:[%s4] sm:$0x3]
    %v51 = vld [vmem:[#allocation2] sm:$0xff]
    %v52 = vld [vmem:[#allocation2 + $0x8] sm:$0xff]
    %53 = vrot.lane.b32.xlu0 %v51, 127
    %v54 = vpop.permute.xlu0 %53
    %55 = vrot.lane.b32.xlu0 %v52, 127
    %v56 = vpop.permute.xlu0 %55
    %v57 = vlaneseq
    %v58 = vand.u32 %v57, 127
    %vm59 = vcmp.lt.s32.totalorder %v58, 127
    %v60 = vsel %vm59, %v54, %v56
    %v61 = vsel %vm59, %v56, %v54
    %62 = vrot.lane.b32.xlu0 %v51, 1
    %v63 = vpop.permute.xlu0 %62
    %64 = vrot.lane.b32.xlu0 %v52, 1
    %v65 = vpop.permute.xlu0 %64
    %vm66 = vcmp.lt.s32.totalorder %v58, 1
    %v67 = vsel %vm66, %v63, %v65
    %v68 = vsel %vm66, %v65, %v63
    %v70 = vlaneseq
    %v71 = vshrl.u32 %v70, 7
    %v72 = vsub.s32 0, %v71
    %v73 = vrot.slane %v48, %v72
    %v74 = vlaneseq
    %v75 = vshrl.u32 %v74, 7
    %v76 = vsub.s32 1, %v75
    %v77 = vrot.slane %v48, %v76
    %v80 = vmul.f32 %v51, %v73
    %v81 = vmul.f32 %v52, %v77
    %v83 = vlaneseq
    %v84 = vshrl.u32 %v83, 7
    %v85 = vsub.s32 0, %v84
    %v86 = vrot.slane %v49, %v85
    %v87 = vlaneseq
    %v88 = vshrl.u32 %v87, 7
    %v89 = vsub.s32 1, %v88
    %v90 = vrot.slane %v49, %v89
    %v93 = vmul.f32 %v60, %v86
    %v94 = vmul.f32 %v61, %v90
    %v95 = vadd.f32 %v80, %v93
    %v96 = vadd.f32 %v81, %v94
    %v98 = vlaneseq
    %v99 = vshrl.u32 %v98, 7
    %v100 = vsub.s32 0, %v99
    %v101 = vrot.slane %v50, %v100
    %v102 = vlaneseq
    %v103 = vshrl.u32 %v102, 7
    %v104 = vsub.s32 1, %v103
    %v105 = vrot.slane %v50, %v104
    %v108 = vmul.f32 %v68, %v101
    %v109 = vmul.f32 %v67, %v105
    %v110 = vadd.f32 %v95, %v108
    %v111 = vadd.f32 %v96, %v109
    %112 = vst [vmem:[#allocation7] sm:$0xff] %v110
    %113 = vst [vmem:[#allocation7 + $0x8] sm:$0xff] %v111
    %v114 = vld [vmem:[#allocation5] sm:$0xff]
    %v115 = vld [vmem:[#allocation5 + $0x8] sm:$0xff]
    %116 = vrot.lane.b32.xlu0 %v114, 127
    %v117 = vpop.permute.xlu0 %116
    %118 = vrot.lane.b32.xlu0 %v115, 127
    %v119 = vpop.permute.xlu0 %118
    %v120 = vsel %vm59, %v117, %v119
    %v121 = vsel %vm59, %v119, %v117
    %122 = vrot.lane.b32.xlu0 %v114, 1
    %v123 = vpop.permute.xlu0 %122
    %124 = vrot.lane.b32.xlu0 %v115, 1
    %v125 = vpop.permute.xlu0 %124
    %v126 = vsel %vm66, %v123, %v125
    %v127 = vsel %vm66, %v125, %v123
    %v128 = vmul.f32 %v114, %v73
    %v129 = vmul.f32 %v115, %v77
    %v130 = vmul.f32 %v120, %v86
    %v131 = vmul.f32 %v121, %v90
    %v132 = vadd.f32 %v128, %v130
    %v133 = vadd.f32 %v129, %v131
    %v134 = vmul.f32 %v127, %v101
    %v135 = vmul.f32 %v126, %v105
    %v136 = vadd.f32 %v132, %v134
    %v137 = vadd.f32 %v133, %v135
    %138 = vst [vmem:[#allocation8] sm:$0xff] %v136
    %139 = vst [vmem:[#allocation8 + $0x8] sm:$0xff] %v137
    // Predicated region
    $region30: #{tpu_custom_call.1} parent=1 // pred_check
      _
    $region31: #{tpu_custom_call.1} parent=1 // pred_check_branch
      %141 = sbr.rel (0) target = $region33
    $region32: #{tpu_custom_call.1} parent=1 // pred_region
      %s143 = ssub.s32 256, 256
      %144 = vsyncadd [#allocation4], %s143
      %s146 = sshll.u32 [#allocation7], 4
      %s147 = int_to_ptr.vmem [resolvable:$true] %s146
      %149 = dma.vmem_to_hbm [thread:$0]  %s147, 256, %s5, [#allocation4]
    $region33: #{tpu_custom_call.1} parent=1 // pred_fallthru
      _
    // Predicated region
    $region34: #{tpu_custom_call.1} parent=1 // pred_check
      _
    $region35: #{tpu_custom_call.1} parent=1 // pred_check_branch
      %151 = sbr.rel (0) target = $region37
    $region36: #{tpu_custom_call.1} parent=1 // pred_region
      %s153 = ssub.s32 256, 256
      %154 = vsyncadd [#allocation9], %s153
      %s156 = sshll.u32 [#allocation8], 4
      %s157 = int_to_ptr.vmem [resolvable:$true] %s156
      %159 = dma.vmem_to_hbm [thread:$0]  %s157, 256, %s6, [#allocation9]
    $region37: #{tpu_custom_call.1} parent=1 // pred_fallthru
      _
    // Predicated region
    $region38: #{tpu_custom_call.1} parent=1 // pred_check
      _
    $region39: #{tpu_custom_call.1} parent=1 // pred_check_branch
      %161 = sbr.rel (0) target = $region41
    $region40: #{tpu_custom_call.1} parent=1 // pred_region
      %162 = dma.done [#allocation4], 256
    $region41: #{tpu_custom_call.1} parent=1 // pred_fallthru
      _
    // Predicated region
    $region42: #{tpu_custom_call.1} parent=1 // pred_check
      _
    $region43: #{tpu_custom_call.1} parent=1 // pred_check_branch
      %164 = sbr.rel (0) target = $region45
    $region44: #{tpu_custom_call.1} parent=1 // pred_region
      %165 = dma.done [#allocation9], 256
    $region45: #{tpu_custom_call.1} parent=1 // pred_fallthru
      _
    %166 = vsyncpa [#allocation3], 1
    %167 = vsyncpa [#allocation6], 1
    %168 = vsyncpa [#allocation4], 1
    %169 = vsyncpa [#allocation9], 1

</llo_original>
